<compile_context>
chip_gen: v7x
topology: tpu7x:2x2x1
jax: 0.10.0
libtpu: 0.0.40
codegen_flags: <defaults>
</compile_context>

<pallas_src>
import jax
import jax.numpy as jnp
from jax.experimental import pallas as pl
from jax.experimental.pallas import tpu as pltpu


def _round_up(x, m):
    return ((x + m - 1) // m) * m


def ncdm_kernel(stu_ref, kdiff_ref, ediff_ref, kp_ref,
                w1t_ref, b1_ref, w2t_ref, b2_ref, w3_ref, b3_ref,
                out_ref):
    # --- embedding post-processing (sigmoids, f32 on VPU/EUP) ---
    stat_emb = jax.nn.sigmoid(stu_ref[...])            # [TB, K]
    k_diff = jax.nn.sigmoid(kdiff_ref[...])            # [TB, K]
    e_diff = jax.nn.sigmoid(ediff_ref[...])            # [TB, 1]

    # --- interaction ---
    input_x = e_diff * (stat_emb - k_diff) * kp_ref[...]    # [TB, K] f32

    # --- prednet_full1 (PosLinear K -> 512) + sigmoid ---
    # Weights arrive pre-|abs|'d, pre-transposed [K, 512], bf16. Accumulate f32.
    h1 = jax.nn.sigmoid(
        jnp.dot(input_x.astype(jnp.bfloat16), w1t_ref[...],
                preferred_element_type=jnp.float32) + b1_ref[...])
    # TODO(synk): nn.Dropout(p=0.5) is identity in eval mode; training-mode
    # stochastic masking (pltpu.prng_random_bits) not implemented here.

    # --- prednet_full2 (PosLinear 512 -> 256) + sigmoid ---
    h2 = jax.nn.sigmoid(
        jnp.dot(h1.astype(jnp.bfloat16), w2t_ref[...],
                preferred_element_type=jnp.float32) + b2_ref[...])

    # --- prednet_full3 (PosLinear 256 -> 1) + sigmoid ---
    # N=1 matmul wastes the MXU; VPU multiply + XLU lane reduction instead.
    logits = jnp.sum(h2 * w3_ref[...], axis=-1, keepdims=True) + b3_ref[...]
    out_ref[...] = jax.nn.sigmoid(logits)               # [TB, 1]


def ncdm_forward(stu_id, input_exercise, input_knowledge_point, params, *, tb=1024):
    # Glue: embedding row gathers (plain JAX).
    # TODO(synk): could fuse the gather into the kernel via
    # PrefetchScalarGridSpec + pl.Element row-gather BlockSpecs; kept in JAX
    # here since the tables are tiny and the kernel is matmul-dominated.
    stu_rows = params["student_emb"][stu_id]              # [B, K]
    kdiff_rows = params["k_difficulty"][input_exercise]   # [B, K]
    ediff_rows = params["e_difficulty"][input_exercise]   # [B, 1]
    kp = input_knowledge_point.astype(jnp.float32)        # [B, K]

    B, K = stu_rows.shape
    L1 = params["w1"].shape[0]
    L2 = params["w2"].shape[0]

    # PosLinear weight: 2*relu(-W)+W == |W|. Hoist |W| + transpose + bf16 cast
    # out of the kernel so they happen once per call, not once per batch tile.
    w1t = jnp.abs(params["w1"]).T.astype(jnp.bfloat16)     # [K,  L1]
    w2t = jnp.abs(params["w2"]).T.astype(jnp.bfloat16)     # [L1, L2]
    w3r = jnp.abs(params["w3"]).astype(jnp.float32)        # [1,  L2]  (VPU path)
    b1 = params["b1"].reshape(1, L1).astype(jnp.float32)
    b2 = params["b2"].reshape(1, L2).astype(jnp.float32)
    b3 = params["b3"].reshape(1, 1).astype(jnp.float32)

    # Batch tiling: tile size is a multiple of 8 (sublane); pad B up to it.
    tb = min(tb, _round_up(B, 8))
    tb = _round_up(tb, 8)
    Bp = _round_up(B, tb)
    if Bp != B:
        pad = ((0, Bp - B), (0, 0))
        stu_rows = jnp.pad(stu_rows, pad)
        kdiff_rows = jnp.pad(kdiff_rows, pad)
        ediff_rows = jnp.pad(ediff_rows, pad)
        kp = jnp.pad(kp, pad)

    grid = (Bp // tb,)

    batch_spec_k = pl.BlockSpec((tb, K), lambda i: (i, 0))
    batch_spec_1 = pl.BlockSpec((tb, 1), lambda i: (i, 0))

    def const_spec(shape):
        # Weights/biases: same block for every grid step -> resident in VMEM.
        return pl.BlockSpec(shape, lambda i: (0,) * len(shape))

    out = pl.pallas_call(
        ncdm_kernel,
        out_shape=jax.ShapeDtypeStruct((Bp, 1), jnp.float32),
        grid=grid,
        in_specs=[batch_spec_k, batch_spec_k, batch_spec_1, batch_spec_k,
                  const_spec(w1t.shape), const_spec(b1.shape),
                  const_spec(w2t.shape), const_spec(b2.shape),
                  const_spec(w3r.shape), const_spec(b3.shape)],
        out_specs=batch_spec_1,
        compiler_params=pltpu.CompilerParams(
            dimension_semantics=("parallel",),
            vmem_limit_bytes=48 * 1024 * 1024),
    )(stu_rows, kdiff_rows, ediff_rows, kp, w1t, b1, w2t, b2, w3r, b3)

    return out[:B, 0]       # matches output_1.view(-1)


def init_params(key, knowledge_n, exer_n, student_n, len1=512, len2=256):
    ks = jax.random.split(key, 9)

    def xavier(k, shape):
        fan_out, fan_in = shape
        std = (2.0 / (fan_in + fan_out)) ** 0.5
        return std * jax.random.normal(k, shape, dtype=jnp.float32)

    return {
        "student_emb": xavier(ks[0], (student_n, knowledge_n)),
        "k_difficulty": xavier(ks[1], (exer_n, knowledge_n)),
        "e_difficulty": xavier(ks[2], (exer_n, 1)),
        "w1": xavier(ks[3], (len1, knowledge_n)),
        "b1": jnp.zeros((len1,), jnp.float32),
        "w2": xavier(ks[4], (len2, len1)),
        "b2": jnp.zeros((len2,), jnp.float32),
        "w3": xavier(ks[5], (1, len2)),
        "b3": jnp.zeros((1,), jnp.float32),
    }


def reference_forward(stu_id, input_exercise, input_knowledge_point, params):
    # Pure-JAX f32 reference (same math as the PyTorch module, no Pallas).
    def pos_w(w):
        return 2.0 * jnp.maximum(-w, 0.0) + w
    stat = jax.nn.sigmoid(params["student_emb"][stu_id])
    kd = jax.nn.sigmoid(params["k_difficulty"][input_exercise])
    ed = jax.nn.sigmoid(params["e_difficulty"][input_exercise])
    x = ed * (stat - kd) * input_knowledge_point
    h1 = jax.nn.sigmoid(x @ pos_w(params["w1"]).T + params["b1"])
    h2 = jax.nn.sigmoid(h1 @ pos_w(params["w2"]).T + params["b2"])
    out = jax.nn.sigmoid(h2 @ pos_w(params["w3"]).T + params["b3"])
    return out.reshape(-1)


if __name__ == "__main__":
    knowledge_n = 32
    exer_n = 20
    student_n = 16
    batch = 8

    key = jax.random.PRNGKey(0)
    kp_key, stu_key, exer_key, kpt_key = jax.random.split(key, 4)

    params = init_params(kp_key, knowledge_n, exer_n, student_n)

    stu_id = jax.random.randint(stu_key, (batch,), 0, student_n, dtype=jnp.int32)
    input_exercise = jax.random.randint(exer_key, (batch,), 0, exer_n, dtype=jnp.int32)
    input_knowledge_point = jax.random.bernoulli(
        kpt_key, 0.5, (batch, knowledge_n)).astype(jnp.float32)

    out = ncdm_forward(stu_id, input_exercise, input_knowledge_point, params)
    out = jax.block_until_ready(out)

    ref = reference_forward(stu_id, input_exercise, input_knowledge_point, params)
    assert out.shape == (batch,)
    # bf16 matmul path vs f32 reference: expect ~1e-2-level agreement.
    assert jnp.allclose(out, ref, atol=2e-2, rtol=2e-2), (out, ref)

    print("KERNEL_OK")
</pallas_src>

<mosaic_0001>
module attributes {stable_mosaic.version = 11 : i64} {
  func.func @ncdm_kernel(%arg0: i32, %arg1: memref<8x32xf32, #tpu.memory_space<vmem>>, %arg2: memref<8x32xf32, #tpu.memory_space<vmem>>, %arg3: memref<8x1xf32, #tpu.memory_space<vmem>>, %arg4: memref<8x32xf32, #tpu.memory_space<vmem>>, %arg5: memref<32x512xbf16, #tpu.memory_space<vmem>>, %arg6: memref<1x512xf32, #tpu.memory_space<vmem>>, %arg7: memref<512x256xbf16, #tpu.memory_space<vmem>>, %arg8: memref<1x256xf32, #tpu.memory_space<vmem>>, %arg9: memref<1x256xf32, #tpu.memory_space<vmem>>, %arg10: memref<1x1xf32, #tpu.memory_space<vmem>>, %arg11: memref<8x1xf32, #tpu.memory_space<vmem>>) attributes {dimension_semantics = [#tpu.dimension_semantics<parallel>], iteration_bounds = array<i64: 1>, scalar_prefetch = 0 : i64, scratch_operands = 0 : i64, tpu.core_type = #tpu.core_type<tc>, window_params = [{transform_indices = @transform_0, window_bounds = array<i64: 8, 32>}, {transform_indices = @transform_1, window_bounds = array<i64: 8, 32>}, {transform_indices = @transform_2, window_bounds = array<i64: 8, 1>}, {transform_indices = @transform_3, window_bounds = array<i64: 8, 32>}, {pipeline_mode = #tpu.pipeline_mode<synchronous>, transform_indices = @transform_4, window_bounds = array<i64: 32, 512>}, {pipeline_mode = #tpu.pipeline_mode<synchronous>, transform_indices = @transform_5, window_bounds = array<i64: 1, 512>}, {pipeline_mode = #tpu.pipeline_mode<synchronous>, transform_indices = @transform_6, window_bounds = array<i64: 512, 256>}, {pipeline_mode = #tpu.pipeline_mode<synchronous>, transform_indices = @transform_7, window_bounds = array<i64: 1, 256>}, {pipeline_mode = #tpu.pipeline_mode<synchronous>, transform_indices = @transform_8, window_bounds = array<i64: 1, 256>}, {pipeline_mode = #tpu.pipeline_mode<synchronous>, transform_indices = @transform_9, window_bounds = array<i64: 1, 1>}, {transform_indices = @transform_10, window_bounds = array<i64: 8, 1>}]} {
    %c0 = arith.constant 0 : index
    %c0_0 = arith.constant 0 : index
    %0 = vector.load %arg1[%c0, %c0_0] : memref<8x32xf32, #tpu.memory_space<vmem>>, vector<8x32xf32>
    %1 = arith.negf %0 : vector<8x32xf32>
    %2 = math.exp %1 : vector<8x32xf32>
    %cst = arith.constant 1.000000e+00 : f32
    %3 = vector.broadcast %cst : f32 to vector<8x32xf32>
    %4 = arith.addf %3, %2 : vector<8x32xf32>
    %5 = arith.divf %3, %4 : vector<8x32xf32>
    %c0_1 = arith.constant 0 : index
    %c0_2 = arith.constant 0 : index
    %6 = vector.load %arg2[%c0_1, %c0_2] : memref<8x32xf32, #tpu.memory_space<vmem>>, vector<8x32xf32>
    %7 = arith.negf %6 : vector<8x32xf32>
    %8 = math.exp %7 : vector<8x32xf32>
    %cst_3 = arith.constant 1.000000e+00 : f32
    %9 = vector.broadcast %cst_3 : f32 to vector<8x32xf32>
    %10 = arith.addf %9, %8 : vector<8x32xf32>
    %11 = arith.divf %9, %10 : vector<8x32xf32>
    %c0_4 = arith.constant 0 : index
    %c0_5 = arith.constant 0 : index
    %12 = vector.load %arg3[%c0_4, %c0_5] : memref<8x1xf32, #tpu.memory_space<vmem>>, vector<8x1xf32>
    %13 = arith.negf %12 : vector<8x1xf32>
    %14 = math.exp %13 : vector<8x1xf32>
    %cst_6 = arith.constant 1.000000e+00 : f32
    %15 = vector.broadcast %cst_6 : f32 to vector<8x1xf32>
    %16 = arith.addf %15, %14 : vector<8x1xf32>
    %17 = arith.divf %15, %16 : vector<8x1xf32>
    %18 = arith.subf %5, %11 : vector<8x32xf32>
    %19 = vector.broadcast %17 : vector<8x1xf32> to vector<8x32xf32>
    %20 = arith.mulf %19, %18 : vector<8x32xf32>
    %c0_7 = arith.constant 0 : index
    %c0_8 = arith.constant 0 : index
    %21 = vector.load %arg4[%c0_7, %c0_8] : memref<8x32xf32, #tpu.memory_space<vmem>>, vector<8x32xf32>
    %22 = arith.mulf %20, %21 : vector<8x32xf32>
    %23 = arith.truncf %22 : vector<8x32xf32> to vector<8x32xbf16>
    %c0_9 = arith.constant 0 : index
    %c0_10 = arith.constant 0 : index
    %24 = vector.load %arg5[%c0_9, %c0_10] : memref<32x512xbf16, #tpu.memory_space<vmem>>, vector<32x512xbf16>
    %cst_11 = arith.constant dense<0.000000e+00> : vector<8x512xf32>
    %25 = tpu.matmul %23, %24, %cst_11 {dimension_numbers = #tpu.dot_dimension_numbers<[1], [0], [0], [1], [0, 0, 1, 1], [], []>} : vector<8x32xbf16>, vector<32x512xbf16>, vector<8x512xf32> -> vector<8x512xf32>
    %c0_12 = arith.constant 0 : index
    %c0_13 = arith.constant 0 : index
    %26 = vector.load %arg6[%c0_12, %c0_13] : memref<1x512xf32, #tpu.memory_space<vmem>>, vector<1x512xf32>
    %27 = vector.broadcast %26 : vector<1x512xf32> to vector<8x512xf32>
    %28 = arith.addf %25, %27 : vector<8x512xf32>
    %29 = arith.negf %28 : vector<8x512xf32>
    %30 = math.exp %29 : vector<8x512xf32>
    %cst_14 = arith.constant 1.000000e+00 : f32
    %31 = vector.broadcast %cst_14 : f32 to vector<8x512xf32>
    %32 = arith.addf %31, %30 : vector<8x512xf32>
    %33 = arith.divf %31, %32 : vector<8x512xf32>
    %34 = arith.truncf %33 : vector<8x512xf32> to vector<8x512xbf16>
    %c0_15 = arith.constant 0 : index
    %c0_16 = arith.constant 0 : index
    %35 = vector.load %arg7[%c0_15, %c0_16] : memref<512x256xbf16, #tpu.memory_space<vmem>>, vector<512x256xbf16>
    %cst_17 = arith.constant dense<0.000000e+00> : vector<8x256xf32>
    %36 = tpu.matmul %34, %35, %cst_17 {dimension_numbers = #tpu.dot_dimension_numbers<[1], [0], [0], [1], [0, 0, 1, 1], [], []>} : vector<8x512xbf16>, vector<512x256xbf16>, vector<8x256xf32> -> vector<8x256xf32>
    %c0_18 = arith.constant 0 : index
    %c0_19 = arith.constant 0 : index
    %37 = vector.load %arg8[%c0_18, %c0_19] : memref<1x256xf32, #tpu.memory_space<vmem>>, vector<1x256xf32>
    %38 = vector.broadcast %37 : vector<1x256xf32> to vector<8x256xf32>
    %39 = arith.addf %36, %38 : vector<8x256xf32>
    %40 = arith.negf %39 : vector<8x256xf32>
    %41 = math.exp %40 : vector<8x256xf32>
    %cst_20 = arith.constant 1.000000e+00 : f32
    %42 = vector.broadcast %cst_20 : f32 to vector<8x256xf32>
    %43 = arith.addf %42, %41 : vector<8x256xf32>
    %44 = arith.divf %42, %43 : vector<8x256xf32>
    %c0_21 = arith.constant 0 : index
    %c0_22 = arith.constant 0 : index
    %45 = vector.load %arg9[%c0_21, %c0_22] : memref<1x256xf32, #tpu.memory_space<vmem>>, vector<1x256xf32>
    %46 = vector.broadcast %45 : vector<1x256xf32> to vector<8x256xf32>
    %47 = arith.mulf %44, %46 : vector<8x256xf32>
    %cst_23 = arith.constant dense<0.000000e+00> : vector<8xf32>
    %48 = vector.multi_reduction <add>, %47, %cst_23 [1] : vector<8x256xf32> to vector<8xf32>
    %49 = vector.shape_cast %48 : vector<8xf32> to vector<8x1xf32>
    %c0_24 = arith.constant 0 : index
    %c0_25 = arith.constant 0 : index
    %50 = vector.load %arg10[%c0_24, %c0_25] : memref<1x1xf32, #tpu.memory_space<vmem>>, vector<1x1xf32>
    %51 = vector.broadcast %50 : vector<1x1xf32> to vector<8x1xf32>
    %52 = arith.addf %49, %51 : vector<8x1xf32>
    %53 = arith.negf %52 : vector<8x1xf32>
    %54 = math.exp %53 : vector<8x1xf32>
    %cst_26 = arith.constant 1.000000e+00 : f32
    %55 = vector.broadcast %cst_26 : f32 to vector<8x1xf32>
    %56 = arith.addf %55, %54 : vector<8x1xf32>
    %57 = arith.divf %55, %56 : vector<8x1xf32>
    %c0_27 = arith.constant 0 : index
    %c0_28 = arith.constant 0 : index
    %58 = vector.load %arg11[%c0_27, %c0_28] : memref<8x1xf32, #tpu.memory_space<vmem>>, vector<8x1xf32>
    tpu.vector_store %arg11[%c0_27, %c0_28], %57 {strides = array<i32>} : memref<8x1xf32, #tpu.memory_space<vmem>>, vector<8x1xf32>,
    return
  }
  func.func @transform_0(%arg0: i32) -> (i32, i32) {
    %c0_i32 = arith.constant 0 : i32
    %c0_i32_0 = arith.constant 0 : i32
    return %arg0, %c0_i32 : i32, i32
  }
  func.func @transform_1(%arg0: i32) -> (i32, i32) {
    %c0_i32 = arith.constant 0 : i32
    %c0_i32_0 = arith.constant 0 : i32
    return %arg0, %c0_i32 : i32, i32
  }
  func.func @transform_2(%arg0: i32) -> (i32, i32) {
    %c0_i32 = arith.constant 0 : i32
    %c0_i32_0 = arith.constant 0 : i32
    return %arg0, %c0_i32 : i32, i32
  }
  func.func @transform_3(%arg0: i32) -> (i32, i32) {
    %c0_i32 = arith.constant 0 : i32
    %c0_i32_0 = arith.constant 0 : i32
    return %arg0, %c0_i32 : i32, i32
  }
  func.func @transform_4(%arg0: i32) -> (i32, i32) {
    %c0_i32 = arith.constant 0 : i32
    %c0_i32_0 = arith.constant 0 : i32
    %c0_i32_1 = arith.constant 0 : i32
    return %c0_i32, %c0_i32_0 : i32, i32
  }
  func.func @transform_5(%arg0: i32) -> (i32, i32) {
    %c0_i32 = arith.constant 0 : i32
    %c0_i32_0 = arith.constant 0 : i32
    %c0_i32_1 = arith.constant 0 : i32
    return %c0_i32, %c0_i32_0 : i32, i32
  }
  func.func @transform_6(%arg0: i32) -> (i32, i32) {
    %c0_i32 = arith.constant 0 : i32
    %c0_i32_0 = arith.constant 0 : i32
    %c0_i32_1 = arith.constant 0 : i32
    return %c0_i32, %c0_i32_0 : i32, i32
  }
  func.func @transform_7(%arg0: i32) -> (i32, i32) {
    %c0_i32 = arith.constant 0 : i32
    %c0_i32_0 = arith.constant 0 : i32
    %c0_i32_1 = arith.constant 0 : i32
    return %c0_i32, %c0_i32_0 : i32, i32
  }
  func.func @transform_8(%arg0: i32) -> (i32, i32) {
    %c0_i32 = arith.constant 0 : i32
    %c0_i32_0 = arith.constant 0 : i32
    %c0_i32_1 = arith.constant 0 : i32
    return %c0_i32, %c0_i32_0 : i32, i32
  }
  func.func @transform_9(%arg0: i32) -> (i32, i32) {
    %c0_i32 = arith.constant 0 : i32
    %c0_i32_0 = arith.constant 0 : i32
    %c0_i32_1 = arith.constant 0 : i32
    return %c0_i32, %c0_i32_0 : i32, i32
  }
  func.func @transform_10(%arg0: i32) -> (i32, i32) {
    %c0_i32 = arith.constant 0 : i32
    %c0_i32_0 = arith.constant 0 : i32
    return %arg0, %c0_i32 : i32, i32
  }
}

</mosaic_0001>

<llo_original>
// kernel: tpu_custom_call.1
$region0: #{tpu_custom_call.1}
  #allocation0 [shape = 'u32[]', space=smem, size = 0x4, offset = 0x4, fixed_abs, tag = 'smem constant byte address 0x4 - core index']
  #allocation1 [shape = 'u32[144,128]{1,0:T(1,128)}', space=vmem, size = 0x12000, scoped, tag = 'internal scratch']
  #allocation2 [shape = 'f32[1,1]{1,0:T(1,128)S(1)}', space=vmem, size = 0x200, scoped, tag = 'scoped memory for tpu_custom_call.1']
  %s0 = inlined_call_operand.vmem [shape: f32[8,32], index: 0, kind: input, shape index: {}]
  %s1 = inlined_call_operand.vmem [shape: f32[8,32], index: 1, kind: input, shape index: {}]
  %s2 = inlined_call_operand.vmem [shape: f32[8,1], index: 2, kind: input, shape index: {}]
  %s3 = inlined_call_operand.vmem [shape: f32[8,32], index: 3, kind: input, shape index: {}]
  %s4 = inlined_call_operand.hbm [shape: bf16[32,512], index: 4, kind: input, shape index: {}]
  %s5 = inlined_call_operand.vmem [shape: f32[1,512], index: 5, kind: input, shape index: {}]
  %s6 = inlined_call_operand.hbm [shape: bf16[512,256], index: 6, kind: input, shape index: {}]
  %s7 = inlined_call_operand.vmem [shape: f32[1,256], index: 7, kind: input, shape index: {}]
  %s8 = inlined_call_operand.vmem [shape: f32[1,256], index: 8, kind: input, shape index: {}]
  %s9 = inlined_call_operand.<no memory space> [shape: f32[1,1], index: 9, kind: input, shape index: {}]
  %s10 = inlined_call_operand.vmem [shape: f32[8,1], index: 10, kind: output, shape index: {}]
  %s11 = sld [smem:[#allocation0]]
  $region58: #{tpu_custom_call.1} parent=0
    _
  %s13 = ssub.s32 1, %s11
  %s14 = scalar_select 0, %s13, %s11
  %v15 = vstv %s9
  %16 = vst [vmem:[#allocation2] sm:$0x1] %v15
  $region1: #{tpu_custom_call.1} parent=0
    #allocation3 [shape = 'u8[32768]{0}', space=vmem, size = 0x8000, scoped, tag = 'input window, operand 4, single buffered']
    #allocation4 [shape = 's32[1]{0}', space=sflag, size = 0x4, scoped, tag = 'scoped memory for tpu_custom_call.1']
    #allocation5 [shape = 'u8[262144]{0}', space=vmem, size = 0x40000, scoped, tag = 'input window, operand 6, single buffered']
    #allocation6 [shape = 's32[1]{0}', space=sflag, size = 0x4, scoped, tag = 'scoped memory for tpu_custom_call.1']
    %17 = vsyncpa [#allocation4], 0
    %18 = vsyncpa [#allocation6], 0
    // Predicated region
    $region2: #{tpu_custom_call.1} parent=1 // pred_check
      _
    $region3: #{tpu_custom_call.1} parent=1 // pred_check_branch
      %20 = sbr.rel (0) target = $region5
    $region4: #{tpu_custom_call.1} parent=1 // pred_region
      _
    $region5: #{tpu_custom_call.1} parent=1 // pred_fallthru
      _
    // Predicated region
    $region6: #{tpu_custom_call.1} parent=1 // pred_check
      _
    $region7: #{tpu_custom_call.1} parent=1 // pred_check_branch
      %22 = sbr.rel (0) target = $region9
    $region8: #{tpu_custom_call.1} parent=1 // pred_region
      _
    $region9: #{tpu_custom_call.1} parent=1 // pred_fallthru
      _
    // Predicated region
    $region10: #{tpu_custom_call.1} parent=1 // pred_check
      _
    $region11: #{tpu_custom_call.1} parent=1 // pred_check_branch
      %24 = sbr.rel (0) target = $region13
    $region12: #{tpu_custom_call.1} parent=1 // pred_region
      _
    $region13: #{tpu_custom_call.1} parent=1 // pred_fallthru
      _
    // Predicated region
    $region14: #{tpu_custom_call.1} parent=1 // pred_check
      _
    $region15: #{tpu_custom_call.1} parent=1 // pred_check_branch
      %26 = sbr.rel (0) target = $region17
    $region16: #{tpu_custom_call.1} parent=1 // pred_region
      _
    $region17: #{tpu_custom_call.1} parent=1 // pred_fallthru
      _
    // Predicated region
    $region18: #{tpu_custom_call.1} parent=1 // pred_check
      _
    $region19: #{tpu_custom_call.1} parent=1 // pred_check_branch
      %28 = sbr.rel (0) target = $region21
    $region20: #{tpu_custom_call.1} parent=1 // pred_region
      %s30 = ssub.s32 1024, 1024
      %31 = vsyncadd [#allocation4], %s30
      %s32 = sshll.u32 [#allocation3], 4
      %s33 = int_to_ptr.vmem [resolvable:$true] %s32
      %38 = dma.hbm_to_vmem [thread:$0]  %s4, 1024, %s33, [#allocation4], 256, 256, 16
    $region21: #{tpu_custom_call.1} parent=1 // pred_fallthru
      _
    // Predicated region
    $region22: #{tpu_custom_call.1} parent=1 // pred_check
      _
    $region23: #{tpu_custom_call.1} parent=1 // pred_check_branch
      %40 = sbr.rel (0) target = $region25
    $region24: #{tpu_custom_call.1} parent=1 // pred_region
      _
    $region25: #{tpu_custom_call.1} parent=1 // pred_fallthru
      _
    // Predicated region
    $region26: #{tpu_custom_call.1} parent=1 // pred_check
      _
    $region27: #{tpu_custom_call.1} parent=1 // pred_check_branch
      %42 = sbr.rel (0) target = $region29
    $region28: #{tpu_custom_call.1} parent=1 // pred_region
      %s44 = ssub.s32 8192, 8192
      %45 = vsyncadd [#allocation6], %s44
      %s46 = sshll.u32 [#allocation5], 4
      %s47 = int_to_ptr.vmem [resolvable:$true] %s46
      %52 = dma.hbm_to_vmem [thread:$0]  %s6, 8192, %s47, [#allocation6], 128, 128, 8
    $region29: #{tpu_custom_call.1} parent=1 // pred_fallthru
      _
    // Predicated region
    $region30: #{tpu_custom_call.1} parent=1 // pred_check
      _
    $region31: #{tpu_custom_call.1} parent=1 // pred_check_branch
      %54 = sbr.rel (0) target = $region33
    $region32: #{tpu_custom_call.1} parent=1 // pred_region
      _
    $region33: #{tpu_custom_call.1} parent=1 // pred_fallthru
      _
    // Predicated region
    $region34: #{tpu_custom_call.1} parent=1 // pred_check
      _
    $region35: #{tpu_custom_call.1} parent=1 // pred_check_branch
      %56 = sbr.rel (0) target = $region37
    $region36: #{tpu_custom_call.1} parent=1 // pred_region
      _
    $region37: #{tpu_custom_call.1} parent=1 // pred_fallthru
      _
    // Predicated region
    $region38: #{tpu_custom_call.1} parent=1 // pred_check
      _
    $region39: #{tpu_custom_call.1} parent=1 // pred_check_branch
      %58 = sbr.rel (0) target = $region41
    $region40: #{tpu_custom_call.1} parent=1 // pred_region
      _
    $region41: #{tpu_custom_call.1} parent=1 // pred_fallthru
      _
    // Predicated region
    $region42: #{tpu_custom_call.1} parent=1 // pred_check
      _
    $region43: #{tpu_custom_call.1} parent=1 // pred_check_branch
      %60 = sbr.rel (0) target = $region45
    $region44: #{tpu_custom_call.1} parent=1 // pred_region
      %61 = dma.done [#allocation4], 1024
    $region45: #{tpu_custom_call.1} parent=1 // pred_fallthru
      _
    // Predicated region
    $region46: #{tpu_custom_call.1} parent=1 // pred_check
      _
    $region47: #{tpu_custom_call.1} parent=1 // pred_check_branch
      %63 = sbr.rel (0) target = $region49
    $region48: #{tpu_custom_call.1} parent=1 // pred_region
      %64 = dma.done [#allocation6], 8192
    $region49: #{tpu_custom_call.1} parent=1 // pred_fallthru
      _
    %v66 = vld [vmem:[%s0] sm:$0xff]
    %v67 = vxor.u32 %v66, 2147483648
    %v68 = vmul.f32 %v67, 1.442695
    %v69 = vpow.pop %v68
    %v70 = vadd.f32 %v69, 1.0
    %v71 = vrcp.pop %v70
    %v72 = vmul.f32 1.0, %v71
    %v73 = vld [vmem:[%s1] sm:$0xff]
    %v74 = vxor.u32 %v73, 2147483648
    %v75 = vmul.f32 %v74, 1.442695
    %v76 = vpow.pop %v75
    %v77 = vadd.f32 %v76, 1.0
    %v78 = vrcp.pop %v77
    %v79 = vmul.f32 1.0, %v78
    %v80 = vld [vmem:[%s2] sm:$0xff]
    %v81 = vxor.u32 %v80, 2147483648
    %v82 = vmul.f32 %v81, 1.442695
    %v83 = vpow.pop %v82
    %v84 = vadd.f32 %v83, 1.0
    %v85 = vrcp.pop %v84
    %v86 = vmul.f32 1.0, %v85
    %v87 = vsub.f32 %v72, %v79
    %89 = vset.pattern.permute.xlu0 0
    %90 = vperm.xlu0 %89, %v86
    %v91 = vpop.permute.xlu0 %90
    %v93 = vmul.f32 %v91, %v87
    %v94 = vld [vmem:[%s3] sm:$0xff]
    %v95 = vmul.f32 %v93, %v94
    %v96 = vpack.c.bf16 %v95, %v95
    %v97 = vld [vmem:[#allocation3] sm:$0xff]
    %v98 = vld [vmem:[#allocation3 + $0x8] sm:$0xff]
    %v99 = vld [vmem:[#allocation3 + $0x10] sm:$0xff]
    %v100 = vld [vmem:[#allocation3 + $0x18] sm:$0xff]
    %v101 = vld [vmem:[#allocation3 + $0x20] sm:$0xff]
    %v102 = vld [vmem:[#allocation3 + $0x28] sm:$0xff]
    %v103 = vld [vmem:[#allocation3 + $0x30] sm:$0xff]
    %v104 = vld [vmem:[#allocation3 + $0x38] sm:$0xff]
    %v105 = vld [vmem:[%s5] sm:$0xf]
    %v107 = vlaneseq
    %v108 = vshrl.u32 %v107, 7
    %v109 = vsub.s32 0, %v108
    %v110 = vrot.slane %v105, %v109
    %v111 = vlaneseq
    %v112 = vshrl.u32 %v111, 7
    %v113 = vsub.s32 1, %v112
    %v114 = vrot.slane %v105, %v113
    %v115 = vlaneseq
    %v116 = vshrl.u32 %v115, 7
    %v117 = vsub.s32 2, %v116
    %v118 = vrot.slane %v105, %v117
    %v119 = vlaneseq
    %v120 = vshrl.u32 %v119, 7
    %v121 = vsub.s32 3, %v120
    %v122 = vrot.slane %v105, %v121
    %v135 = vunpack.c.l.b16 %v97
    %v136 = vunpack.c.h.b16 %v97
    %v137 = vunpack.c.l.b16 %v98
    %v138 = vunpack.c.h.b16 %v98
    %v139 = vunpack.c.l.b16 %v99
    %v140 = vunpack.c.h.b16 %v99
    %v141 = vunpack.c.l.b16 %v100
    %v142 = vunpack.c.h.b16 %v100
    %v143 = vunpack.c.l.b16 %v101
    %v144 = vunpack.c.h.b16 %v101
    %v145 = vunpack.c.l.b16 %v102
    %v146 = vunpack.c.h.b16 %v102
    %v147 = vunpack.c.l.b16 %v103
    %v148 = vunpack.c.h.b16 %v103
    %v149 = vunpack.c.l.b16 %v104
    %v150 = vunpack.c.h.b16 %v104
    %v151 = vpack.c.b16 %v139, %v135
    %v152 = vpack.c.b16 %v140, %v136
    %v153 = vpack.c.b16 %v141, %v137
    %v154 = vpack.c.b16 %v142, %v138
    %v155 = vpack.c.b16 %v147, %v143
    %v156 = vpack.c.b16 %v148, %v144
    %v157 = vpack.c.b16 %v149, %v145
    %v158 = vpack.c.b16 %v150, %v146
    %vm167 = vcmask 261120
    %v169 = vsel %vm167, %v96, 0
    %171 = vmatprep.subr.bf16.mxu0 %v152
    %172 = vmatpush1.bf16.msra.mxu0 %v151
    %173 = vmatprep.subr.bf16.mxu0 %v156
    %174 = vmatpush1.bf16.msra.mxu0 %v155
    %175 = vmatprep.subr.bf16.mxu0 0
    %176 = vmatpush1.bf16.msra.mxu0 0
    %177 = vmatprep.subr.bf16.mxu0 0
    %178 = vmatpush1.bf16.msra.mxu0 0
    %179 = vmatprep.subr.bf16.mxu0 0
    %180 = vmatpush1.bf16.msra.mxu0 0
    %181 = vmatprep.subr.bf16.mxu0 0
    %182 = vmatpush1.bf16.msra.mxu0 0
    %183 = vmatprep.subr.bf16.mxu0 0
    %184 = vmatpush1.bf16.msra.mxu0 0
    %185 = vmatprep.subr.bf16.mxu0 0
    %186 = vmatpush1.bf16.msra.mxu0 0
    %187 = vmatprep.subr.bf16.mxu0 0
    %188 = vmatpush1.bf16.msra.mxu0 0
    %189 = vmatprep.subr.bf16.mxu0 0
    %190 = vmatpush1.bf16.msra.mxu0 0
    %191 = vmatprep.subr.bf16.mxu0 0
    %192 = vmatpush1.bf16.msra.mxu0 0
    %193 = vmatprep.subr.bf16.mxu0 0
    %194 = vmatpush1.bf16.msra.mxu0 0
    %195 = vmatprep.subr.bf16.mxu0 0
    %196 = vmatpush1.bf16.msra.mxu0 0
    %197 = vmatprep.subr.bf16.mxu0 0
    %198 = vmatpush1.bf16.msra.mxu0 0
    %199 = vmatprep.subr.bf16.mxu0 0
    %200 = vmatpush1.bf16.msra.mxu0 0
    %201 = vmatprep.subr.bf16.mxu0 0
    %202 = vmatpush1.bf16.msra.mxu0 0
    %203 = vmatprep.mubr.bf16.mxu0 0
    %204 = vmatmul.mubr.bf16.gmra.mrb[0].mxu0 %v169
    %v205 = vpop.f32.mrb[0].mxu0
    %v206 = vadd.f32 %v110, %v205
    %v207 = vpop.f32.mrb[0].mxu0
    %v208 = vadd.f32 %v114, %v207
    %v209 = vpop.f32.mrb[0].mxu0
    %v210 = vpop.f32.mrb[0].mxu0
    %211 = vdwg.mxu0
    %212 = vmatprep.subr.bf16.mxu0 %v154
    %213 = vmatpush1.bf16.msra.mxu0 %v153
    %214 = vmatprep.subr.bf16.mxu0 %v158
    %215 = vmatpush1.bf16.msra.mxu0 %v157
    %216 = vmatprep.subr.bf16.mxu0 0
    %217 = vmatpush1.bf16.msra.mxu0 0
    %218 = vmatprep.subr.bf16.mxu0 0
    %219 = vmatpush1.bf16.msra.mxu0 0
    %220 = vmatprep.subr.bf16.mxu0 0
    %221 = vmatpush1.bf16.msra.mxu0 0
    %222 = vmatprep.subr.bf16.mxu0 0
    %223 = vmatpush1.bf16.msra.mxu0 0
    %224 = vmatprep.subr.bf16.mxu0 0
    %225 = vmatpush1.bf16.msra.mxu0 0
    %226 = vmatprep.subr.bf16.mxu0 0
    %227 = vmatpush1.bf16.msra.mxu0 0
    %228 = vmatprep.subr.bf16.mxu0 0
    %229 = vmatpush1.bf16.msra.mxu0 0
    %230 = vmatprep.subr.bf16.mxu0 0
    %231 = vmatpush1.bf16.msra.mxu0 0
    %232 = vmatprep.subr.bf16.mxu0 0
    %233 = vmatpush1.bf16.msra.mxu0 0
    %234 = vmatprep.subr.bf16.mxu0 0
    %235 = vmatpush1.bf16.msra.mxu0 0
    %236 = vmatprep.subr.bf16.mxu0 0
    %237 = vmatpush1.bf16.msra.mxu0 0
    %238 = vmatprep.subr.bf16.mxu0 0
    %239 = vmatpush1.bf16.msra.mxu0 0
    %240 = vmatprep.subr.bf16.mxu0 0
    %241 = vmatpush1.bf16.msra.mxu0 0
    %242 = vmatprep.subr.bf16.mxu0 0
    %243 = vmatpush1.bf16.msra.mxu0 0
    %244 = vmatprep.mubr.bf16.mxu0 0
    %245 = vmatmul.mubr.bf16.gmra.mrb[0].mxu0 %v169
    %v246 = vpop.f32.mrb[0].mxu0
    %v247 = vadd.f32 %v118, %v246
    %v248 = vpop.f32.mrb[0].mxu0
    %v249 = vadd.f32 %v122, %v248
    %v250 = vpop.f32.mrb[0].mxu0
    %v251 = vpop.f32.mrb[0].mxu0
    %252 = vdwg.mxu0
    %v253 = vxor.u32 %v206, 2147483648
    %v254 = vxor.u32 %v208, 2147483648
    %v255 = vxor.u32 %v247, 2147483648
    %v256 = vxor.u32 %v249, 2147483648
    %v257 = vmul.f32 %v253, 1.442695
    %v258 = vpow.pop %v257
    %v259 = vmul.f32 %v254, 1.442695
    %v260 = vpow.pop %v259
    %v261 = vmul.f32 %v255, 1.442695
    %v262 = vpow.pop %v261
    %v263 = vmul.f32 %v256, 1.442695
    %v264 = vpow.pop %v263
    %v265 = vadd.f32 %v258, 1.0
    %v266 = vadd.f32 %v260, 1.0
    %v267 = vadd.f32 %v262, 1.0
    %v268 = vadd.f32 %v264, 1.0
    %v269 = vrcp.pop %v265
    %v270 = vmul.f32 1.0, %v269
    %v271 = vrcp.pop %v266
    %v272 = vmul.f32 1.0, %v271
    %v273 = vrcp.pop %v267
    %v274 = vmul.f32 1.0, %v273
    %v275 = vrcp.pop %v268
    %v276 = vmul.f32 1.0, %v275
    %v277 = vpack.c.bf16 %v270, %v270
    %v278 = vpack.c.bf16 %v272, %v272
    %v279 = vpack.c.bf16 %v274, %v274
    %v280 = vpack.c.bf16 %v276, %v276
    %v281 = vld [vmem:[#allocation5] sm:$0xff]
    %v282 = vld [vmem:[#allocation5 + $0x8] sm:$0xff]
    %v283 = vld [vmem:[#allocation5 + $0x10] sm:$0xff]
    %v284 = vld [vmem:[#allocation5 + $0x18] sm:$0xff]
    %v285 = vld [vmem:[#allocation5 + $0x20] sm:$0xff]
    %v286 = vld [vmem:[#allocation5 + $0x28] sm:$0xff]
    %v287 = vld [vmem:[#allocation5 + $0x30] sm:$0xff]
    %v288 = vld [vmem:[#allocation5 + $0x38] sm:$0xff]
    %v289 = vld [vmem:[#allocation5 + $0x40] sm:$0xff]
    %v290 = vld [vmem:[#allocation5 + $0x48] sm:$0xff]
    %v291 = vld [vmem:[#allocation5 + $0x50] sm:$0xff]
    %v292 = vld [vmem:[#allocation5 + $0x58] sm:$0xff]
    %v293 = vld [vmem:[#allocation5 + $0x60] sm:$0xff]
    %v294 = vld [vmem:[#allocation5 + $0x68] sm:$0xff]
    %v295 = vld [vmem:[#allocation5 + $0x70] sm:$0xff]
    %v296 = vld [vmem:[#allocation5 + $0x78] sm:$0xff]
    %v297 = vld [vmem:[#allocation5 + $0x80] sm:$0xff]
    %v298 = vld [vmem:[#allocation5 + $0x88] sm:$0xff]
    %v299 = vld [vmem:[#allocation5 + $0x90] sm:$0xff]
    %v300 = vld [vmem:[#allocation5 + $0x98] sm:$0xff]
    %v301 = vld [vmem:[#allocation5 + $0xa0] sm:$0xff]
    %v302 = vld [vmem:[#allocation5 + $0xa8] sm:$0xff]
    %v303 = vld [vmem:[#allocation5 + $0xb0] sm:$0xff]
    %v304 = vld [vmem:[#allocation5 + $0xb8] sm:$0xff]
    %v305 = vld [vmem:[#allocation5 + $0xc0] sm:$0xff]
    %v306 = vld [vmem:[#allocation5 + $0xc8] sm:$0xff]
    %v307 = vld [vmem:[#allocation5 + $0xd0] sm:$0xff]
    %v308 = vld [vmem:[#allocation5 + $0xd8] sm:$0xff]
    %v309 = vld [vmem:[#allocation5 + $0xe0] sm:$0xff]
    %v310 = vld [vmem:[#allocation5 + $0xe8] sm:$0xff]
    %v311 = vld [vmem:[#allocation5 + $0xf0] sm:$0xff]
    %v312 = vld [vmem:[#allocation5 + $0xf8] sm:$0xff]
    %v313 = vld [vmem:[#allocation5 + $0x100] sm:$0xff]
    %v314 = vld [vmem:[#allocation5 + $0x108] sm:$0xff]
    %v315 = vld [vmem:[#allocation5 + $0x110] sm:$0xff]
    %v316 = vld [vmem:[#allocation5 + $0x118] sm:$0xff]
    %v317 = vld [vmem:[#allocation5 + $0x120] sm:$0xff]
    %v318 = vld [vmem:[#allocation5 + $0x128] sm:$0xff]
    %v319 = vld [vmem:[#allocation5 + $0x130] sm:$0xff]
    %v320 = vld [vmem:[#allocation5 + $0x138] sm:$0xff]
    %v321 = vld [vmem:[#allocation5 + $0x140] sm:$0xff]
    %v322 = vld [vmem:[#allocation5 + $0x148] sm:$0xff]
    %v323 = vld [vmem:[#allocation5 + $0x150] sm:$0xff]
    %v324 = vld [vmem:[#allocation5 + $0x158] sm:$0xff]
    %v325 = vld [vmem:[#allocation5 + $0x160] sm:$0xff]
    %v326 = vld [vmem:[#allocation5 + $0x168] sm:$0xff]
    %v327 = vld [vmem:[#allocation5 + $0x170] sm:$0xff]
    %v328 = vld [vmem:[#allocation5 + $0x178] sm:$0xff]
    %v329 = vld [vmem:[#allocation5 + $0x180] sm:$0xff]
    %v330 = vld [vmem:[#allocation5 + $0x188] sm:$0xff]
    %v331 = vld [vmem:[#allocation5 + $0x190] sm:$0xff]
    %v332 = vld [vmem:[#allocation5 + $0x198] sm:$0xff]
    %v333 = vld [vmem:[#allocation5 + $0x1a0] sm:$0xff]
    %v334 = vld [vmem:[#allocation5 + $0x1a8] sm:$0xff]
    %v335 = vld [vmem:[#allocation5 + $0x1b0] sm:$0xff]
    %v336 = vld [vmem:[#allocation5 + $0x1b8] sm:$0xff]
    %v337 = vld [vmem:[#allocation5 + $0x1c0] sm:$0xff]
    %v338 = vld [vmem:[#allocation5 + $0x1c8] sm:$0xff]
    %v339 = vld [vmem:[#allocation5 + $0x1d0] sm:$0xff]
    %v340 = vld [vmem:[#allocation5 + $0x1d8] sm:$0xff]
    %v341 = vld [vmem:[#allocation5 + $0x1e0] sm:$0xff]
    %v342 = vld [vmem:[#allocation5 + $0x1e8] sm:$0xff]
    %v343 = vld [vmem:[#allocation5 + $0x1f0] sm:$0xff]
    %v344 = vld [vmem:[#allocation5 + $0x1f8] sm:$0xff]
    %v345 = vld [vmem:[%s7] sm:$0x3]
    %v347 = vlaneseq
    %v348 = vshrl.u32 %v347, 7
    %v349 = vsub.s32 0, %v348
    %v350 = vrot.slane %v345, %v349
    %v351 = vlaneseq
    %v352 = vshrl.u32 %v351, 7
    %v353 = vsub.s32 1, %v352
    %v354 = vrot.slane %v345, %v353
    %v421 = vunpack.c.l.b16 %v281
    %v422 = vunpack.c.h.b16 %v281
    %v423 = vunpack.c.l.b16 %v282
    %v424 = vunpack.c.h.b16 %v282
    %v425 = vunpack.c.l.b16 %v283
    %v426 = vunpack.c.h.b16 %v283
    %v427 = vunpack.c.l.b16 %v284
    %v428 = vunpack.c.h.b16 %v284
    %v429 = vunpack.c.l.b16 %v285
    %v430 = vunpack.c.h.b16 %v285
    %v431 = vunpack.c.l.b16 %v286
    %v432 = vunpack.c.h.b16 %v286
    %v433 = vunpack.c.l.b16 %v287
    %v434 = vunpack.c.h.b16 %v287
    %v435 = vunpack.c.l.b16 %v288
    %v436 = vunpack.c.h.b16 %v288
    %v437 = vunpack.c.l.b16 %v289
    %v438 = vunpack.c.h.b16 %v289
    %v439 = vunpack.c.l.b16 %v290
    %v440 = vunpack.c.h.b16 %v290
    %v441 = vunpack.c.l.b16 %v291
    %v442 = vunpack.c.h.b16 %v291
    %v443 = vunpack.c.l.b16 %v292
    %v444 = vunpack.c.h.b16 %v292
    %v445 = vunpack.c.l.b16 %v293
    %v446 = vunpack.c.h.b16 %v293
    %v447 = vunpack.c.l.b16 %v294
    %v448 = vunpack.c.h.b16 %v294
    %v449 = vunpack.c.l.b16 %v295
    %v450 = vunpack.c.h.b16 %v295
    %v451 = vunpack.c.l.b16 %v296
    %v452 = vunpack.c.h.b16 %v296
    %v453 = vunpack.c.l.b16 %v297
    %v454 = vunpack.c.h.b16 %v297
    %v455 = vunpack.c.l.b16 %v298
    %v456 = vunpack.c.h.b16 %v298
    %v457 = vunpack.c.l.b16 %v299
    %v458 = vunpack.c.h.b16 %v299
    %v459 = vunpack.c.l.b16 %v300
    %v460 = vunpack.c.h.b16 %v300
    %v461 = vunpack.c.l.b16 %v301
    %v462 = vunpack.c.h.b16 %v301
    %v463 = vunpack.c.l.b16 %v302
    %v464 = vunpack.c.h.b16 %v302
    %v465 = vunpack.c.l.b16 %v303
    %v466 = vunpack.c.h.b16 %v303
    %v467 = vunpack.c.l.b16 %v304
    %v468 = vunpack.c.h.b16 %v304
    %v469 = vunpack.c.l.b16 %v305
    %v470 = vunpack.c.h.b16 %v305
    %v471 = vunpack.c.l.b16 %v306
    %v472 = vunpack.c.h.b16 %v306
    %v473 = vunpack.c.l.b16 %v307
    %v474 = vunpack.c.h.b16 %v307
    %v475 = vunpack.c.l.b16 %v308
    %v476 = vunpack.c.h.b16 %v308
    %v477 = vunpack.c.l.b16 %v309
    %v478 = vunpack.c.h.b16 %v309
    %v479 = vunpack.c.l.b16 %v310
    %v480 = vunpack.c.h.b16 %v310
    %v481 = vunpack.c.l.b16 %v311
    %v482 = vunpack.c.h.b16 %v311
    %v483 = vunpack.c.l.b16 %v312
    %v484 = vunpack.c.h.b16 %v312
    %v485 = vunpack.c.l.b16 %v313
    %v486 = vunpack.c.h.b16 %v313
    %v487 = vunpack.c.l.b16 %v314
    %v488 = vunpack.c.h.b16 %v314
    %v489 = vunpack.c.l.b16 %v315
    %v490 = vunpack.c.h.b16 %v315
    %v491 = vunpack.c.l.b16 %v316
    %v492 = vunpack.c.h.b16 %v316
    %v493 = vunpack.c.l.b16 %v317
    %v494 = vunpack.c.h.b16 %v317
    %v495 = vunpack.c.l.b16 %v318
    %v496 = vunpack.c.h.b16 %v318
    %v497 = vunpack.c.l.b16 %v319
    %v498 = vunpack.c.h.b16 %v319
    %v499 = vunpack.c.l.b16 %v320
    %v500 = vunpack.c.h.b16 %v320
    %v501 = vunpack.c.l.b16 %v321
    %v502 = vunpack.c.h.b16 %v321
    %v503 = vunpack.c.l.b16 %v322
    %v504 = vunpack.c.h.b16 %v322
    %v505 = vunpack.c.l.b16 %v323
    %v506 = vunpack.c.h.b16 %v323
    %v507 = vunpack.c.l.b16 %v324
    %v508 = vunpack.c.h.b16 %v324
    %v509 = vunpack.c.l.b16 %v325
    %v510 = vunpack.c.h.b16 %v325
    %v511 = vunpack.c.l.b16 %v326
    %v512 = vunpack.c.h.b16 %v326
    %v513 = vunpack.c.l.b16 %v327
    %v514 = vunpack.c.h.b16 %v327
    %v515 = vunpack.c.l.b16 %v328
    %v516 = vunpack.c.h.b16 %v328
    %v517 = vunpack.c.l.b16 %v329
    %v518 = vunpack.c.h.b16 %v329
    %v519 = vunpack.c.l.b16 %v330
    %v520 = vunpack.c.h.b16 %v330
    %v521 = vunpack.c.l.b16 %v331
    %v522 = vunpack.c.h.b16 %v331
    %v523 = vunpack.c.l.b16 %v332
    %v524 = vunpack.c.h.b16 %v332
    %v525 = vunpack.c.l.b16 %v333
    %v526 = vunpack.c.h.b16 %v333
    %v527 = vunpack.c.l.b16 %v334
    %v528 = vunpack.c.h.b16 %v334
    %v529 = vunpack.c.l.b16 %v335
    %v530 = vunpack.c.h.b16 %v335
    %v531 = vunpack.c.l.b16 %v336
    %v532 = vunpack.c.h.b16 %v336
    %v533 = vunpack.c.l.b16 %v337
    %v534 = vunpack.c.h.b16 %v337
    %v535 = vunpack.c.l.b16 %v338
    %v536 = vunpack.c.h.b16 %v338
    %v537 = vunpack.c.l.b16 %v339
    %v538 = vunpack.c.h.b16 %v339
    %v539 = vunpack.c.l.b16 %v340
    %v540 = vunpack.c.h.b16 %v340
    %v541 = vunpack.c.l.b16 %v341
    %v542 = vunpack.c.h.b16 %v341
    %v543 = vunpack.c.l.b16 %v342
    %v544 = vunpack.c.h.b16 %v342
    %v545 = vunpack.c.l.b16 %v343
    %v546 = vunpack.c.h.b16 %v343
    %v547 = vunpack.c.l.b16 %v344
    %v548 = vunpack.c.h.b16 %v344
    %v549 = vpack.c.b16 %v423, %v421
    %v550 = vpack.c.b16 %v424, %v422
    %v551 = vpack.c.b16 %v427, %v425
    %v552 = vpack.c.b16 %v428, %v426
    %v553 = vpack.c.b16 %v431, %v429
    %v554 = vpack.c.b16 %v432, %v430
    %v555 = vpack.c.b16 %v435, %v433
    %v556 = vpack.c.b16 %v436, %v434
    %v557 = vpack.c.b16 %v439, %v437
    %v558 = vpack.c.b16 %v440, %v438
    %v559 = vpack.c.b16 %v443, %v441
    %v560 = vpack.c.b16 %v444, %v442
    %v561 = vpack.c.b16 %v447, %v445
    %v562 = vpack.c.b16 %v448, %v446
    %v563 = vpack.c.b16 %v451, %v449
    %v564 = vpack.c.b16 %v452, %v450
    %v565 = vpack.c.b16 %v455, %v453
    %v566 = vpack.c.b16 %v456, %v454
    %v567 = vpack.c.b16 %v459, %v457
    %v568 = vpack.c.b16 %v460, %v458
    %v569 = vpack.c.b16 %v463, %v461
    %v570 = vpack.c.b16 %v464, %v462
    %v571 = vpack.c.b16 %v467, %v465
    %v572 = vpack.c.b16 %v468, %v466
    %v573 = vpack.c.b16 %v471, %v469
    %v574 = vpack.c.b16 %v472, %v470
    %v575 = vpack.c.b16 %v475, %v473
    %v576 = vpack.c.b16 %v476, %v474
    %v577 = vpack.c.b16 %v479, %v477
    %v578 = vpack.c.b16 %v480, %v478
    %v579 = vpack.c.b16 %v483, %v481
    %v580 = vpack.c.b16 %v484, %v482
    %v581 = vpack.c.b16 %v487, %v485
    %v582 = vpack.c.b16 %v488, %v486
    %v583 = vpack.c.b16 %v491, %v489
    %v584 = vpack.c.b16 %v492, %v490
    %v585 = vpack.c.b16 %v495, %v493
    %v586 = vpack.c.b16 %v496, %v494
    %v587 = vpack.c.b16 %v499, %v497
    %v588 = vpack.c.b16 %v500, %v498
    %v589 = vpack.c.b16 %v503, %v501
    %v590 = vpack.c.b16 %v504, %v502
    %v591 = vpack.c.b16 %v507, %v505
    %v592 = vpack.c.b16 %v508, %v506
    %v593 = vpack.c.b16 %v511, %v509
    %v594 = vpack.c.b16 %v512, %v510
    %v595 = vpack.c.b16 %v515, %v513
    %v596 = vpack.c.b16 %v516, %v514
    %v597 = vpack.c.b16 %v519, %v517
    %v598 = vpack.c.b16 %v520, %v518
    %v599 = vpack.c.b16 %v523, %v521
    %v600 = vpack.c.b16 %v524, %v522
    %v601 = vpack.c.b16 %v527, %v525
    %v602 = vpack.c.b16 %v528, %v526
    %v603 = vpack.c.b16 %v531, %v529
    %v604 = vpack.c.b16 %v532, %v530
    %v605 = vpack.c.b16 %v535, %v533
    %v606 = vpack.c.b16 %v536, %v534
    %v607 = vpack.c.b16 %v539, %v537
    %v608 = vpack.c.b16 %v540, %v538
    %v609 = vpack.c.b16 %v543, %v541
    %v610 = vpack.c.b16 %v544, %v542
    %v611 = vpack.c.b16 %v547, %v545
    %v612 = vpack.c.b16 %v548, %v546
    %677 = vmatprep.subr.bf16.mxu0 %v550
    %678 = vmatpush1.bf16.msra.mxu0 %v549
    %679 = vmatprep.subr.bf16.mxu0 %v552
    %680 = vmatpush1.bf16.msra.mxu0 %v551
    %681 = vmatprep.subr.bf16.mxu0 %v554
    %682 = vmatpush1.bf16.msra.mxu0 %v553
    %683 = vmatprep.subr.bf16.mxu0 %v556
    %684 = vmatpush1.bf16.msra.mxu0 %v555
    %685 = vmatprep.subr.bf16.mxu0 %v558
    %686 = vmatpush1.bf16.msra.mxu0 %v557
    %687 = vmatprep.subr.bf16.mxu0 %v560
    %688 = vmatpush1.bf16.msra.mxu0 %v559
    %689 = vmatprep.subr.bf16.mxu0 %v562
    %690 = vmatpush1.bf16.msra.mxu0 %v561
    %691 = vmatprep.subr.bf16.mxu0 %v564
    %692 = vmatpush1.bf16.msra.mxu0 %v563
    %693 = vmatprep.subr.bf16.mxu0 %v566
    %694 = vmatpush1.bf16.msra.mxu0 %v565
    %695 = vmatprep.subr.bf16.mxu0 %v568
    %696 = vmatpush1.bf16.msra.mxu0 %v567
    %697 = vmatprep.subr.bf16.mxu0 %v570
    %698 = vmatpush1.bf16.msra.mxu0 %v569
    %699 = vmatprep.subr.bf16.mxu0 %v572
    %700 = vmatpush1.bf16.msra.mxu0 %v571
    %701 = vmatprep.subr.bf16.mxu0 %v574
    %702 = vmatpush1.bf16.msra.mxu0 %v573
    %703 = vmatprep.subr.bf16.mxu0 %v576
    %704 = vmatpush1.bf16.msra.mxu0 %v575
    %705 = vmatprep.subr.bf16.mxu0 %v578
    %706 = vmatpush1.bf16.msra.mxu0 %v577
    %707 = vmatprep.subr.bf16.mxu0 %v580
    %708 = vmatpush1.bf16.msra.mxu0 %v579
    %709 = vmatprep.mubr.bf16.mxu0 %v278
    %710 = vmatmul.mubr.bf16.gmra.mrb[0].mxu0 %v277
    %v711 = vpop.f32.mrb[0].mxu0
    %v712 = vadd.f32 %v350, %v711
    %v713 = vpop.f32.mrb[0].mxu0
    %v714 = vadd.f32 %v354, %v713
    %v715 = vpop.f32.mrb[0].mxu0
    %v716 = vpop.f32.mrb[0].mxu0
    %717 = vdwg.mxu0
    %718 = vmatprep.subr.bf16.mxu0 %v582
    %719 = vmatpush1.bf16.msra.mxu0 %v581
    %720 = vmatprep.subr.bf16.mxu0 %v584
    %721 = vmatpush1.bf16.msra.mxu0 %v583
    %722 = vmatprep.subr.bf16.mxu0 %v586
    %723 = vmatpush1.bf16.msra.mxu0 %v585
    %724 = vmatprep.subr.bf16.mxu0 %v588
    %725 = vmatpush1.bf16.msra.mxu0 %v587
    %726 = vmatprep.subr.bf16.mxu0 %v590
    %727 = vmatpush1.bf16.msra.mxu0 %v589
    %728 = vmatprep.subr.bf16.mxu0 %v592
    %729 = vmatpush1.bf16.msra.mxu0 %v591
    %730 = vmatprep.subr.bf16.mxu0 %v594
    %731 = vmatpush1.bf16.msra.mxu0 %v593
    %732 = vmatprep.subr.bf16.mxu0 %v596
    %733 = vmatpush1.bf16.msra.mxu0 %v595
    %734 = vmatprep.subr.bf16.mxu0 %v598
    %735 = vmatpush1.bf16.msra.mxu0 %v597
    %736 = vmatprep.subr.bf16.mxu0 %v600
    %737 = vmatpush1.bf16.msra.mxu0 %v599
    %738 = vmatprep.subr.bf16.mxu0 %v602
    %739 = vmatpush1.bf16.msra.mxu0 %v601
    %740 = vmatprep.subr.bf16.mxu0 %v604
    %741 = vmatpush1.bf16.msra.mxu0 %v603
    %742 = vmatprep.subr.bf16.mxu0 %v606
    %743 = vmatpush1.bf16.msra.mxu0 %v605
    %744 = vmatprep.subr.bf16.mxu0 %v608
    %745 = vmatpush1.bf16.msra.mxu0 %v607
    %746 = vmatprep.subr.bf16.mxu0 %v610
    %747 = vmatpush1.bf16.msra.mxu0 %v609
    %748 = vmatprep.subr.bf16.mxu0 %v612
    %749 = vmatpush1.bf16.msra.mxu0 %v611
    %750 = vmatprep.mubr.bf16.mxu0 %v280
    %751 = vmatmul.mubr.bf16.gmra.mrb[0].mxu0 %v279
    %v752 = vpop.f32.mrb[0].mxu0
    %v753 = vadd.f32 %v712, %v752
    %v754 = vpop.f32.mrb[0].mxu0
    %v755 = vadd.f32 %v714, %v754
    %v756 = vpop.f32.mrb[0].mxu0
    %v757 = vpop.f32.mrb[0].mxu0
    %758 = vdwg.mxu0
    %v759 = vxor.u32 %v753, 2147483648
    %v760 = vxor.u32 %v755, 2147483648
    %v761 = vmul.f32 %v759, 1.442695
    %v762 = vpow.pop %v761
    %v763 = vmul.f32 %v760, 1.442695
    %v764 = vpow.pop %v763
    %v765 = vadd.f32 %v762, 1.0
    %v766 = vadd.f32 %v764, 1.0
    %v767 = vrcp.pop %v765
    %v768 = vmul.f32 1.0, %v767
    %v769 = vrcp.pop %v766
    %v770 = vmul.f32 1.0, %v769
    %v771 = vld [vmem:[%s8] sm:$0x3]
    %v773 = vlaneseq
    %v774 = vshrl.u32 %v773, 7
    %v775 = vsub.s32 0, %v774
    %v776 = vrot.slane %v771, %v775
    %v777 = vlaneseq
    %v778 = vshrl.u32 %v777, 7
    %v779 = vsub.s32 1, %v778
    %v780 = vrot.slane %v771, %v779
    %v783 = vmul.f32 %v768, %v776
    %v784 = vmul.f32 %v770, %v780
    %v785 = vadd.f32 %v783, %v784
    %786 = vadd.xlane.f32.xlu0 %v785
    %v787 = vpop.xlane.xlu0 %786
    %v788 = vld [vmem:[#allocation2] sm:$0x1]
    %v790 = vlaneseq
    %v791 = vshrl.u32 %v790, 7
    %v792 = vsub.s32 0, %v791
    %v793 = vrot.slane %v788, %v792
    %v795 = vadd.f32 %v787, %v793
    %v796 = vxor.u32 %v795, 2147483648
    %v797 = vmul.f32 %v796, 1.442695
    %v798 = vpow.pop %v797
    %v799 = vadd.f32 %v798, 1.0
    %v800 = vrcp.pop %v799
    %v801 = vmul.f32 1.0, %v800
    %vm802 = vcmask 7168
    %803 = vst.msk [vmem:[%s10] sm:$0xff] %vm802, %v801
    // Predicated region
    $region50: #{tpu_custom_call.1} parent=1 // pred_check
      _
    $region51: #{tpu_custom_call.1} parent=1 // pred_check_branch
      %805 = sbr.rel (0) target = $region53
    $region52: #{tpu_custom_call.1} parent=1 // pred_region
      _
    $region53: #{tpu_custom_call.1} parent=1 // pred_fallthru
      _
    // Predicated region
    $region54: #{tpu_custom_call.1} parent=1 // pred_check
      _
    $region55: #{tpu_custom_call.1} parent=1 // pred_check_branch
      %807 = sbr.rel (0) target = $region57
    $region56: #{tpu_custom_call.1} parent=1 // pred_region
      _
    $region57: #{tpu_custom_call.1} parent=1 // pred_fallthru
      _
    %808 = vsyncpa [#allocation4], 1
    %809 = vsyncpa [#allocation6], 1

</llo_original>
